<compile_context>
chip_gen: v7x
topology: tpu7x:2x2x1
jax: 0.10.0
libtpu: 0.0.40
codegen_flags: <defaults>
</compile_context>

<pallas_src>
import functools

import jax
import jax.numpy as jnp
from jax.experimental import pallas as pl
from jax.experimental.pallas import tpu as pltpu


def _round_up(x, m):
    return ((x + m - 1) // m) * m


# ---------------------------------------------------------------------------
# Kernel 1: batched input projection over ALL timesteps at once.
#   out = X @ Wi_fused + bi_fused        X: (T*B, E), Wi: (E, 3*Hp), bi: (1, 3*Hp)
# TODO(synk): tile over row blocks with a grid when T*B is large; a single
# VMEM-resident block is ample at these sizes.
# ---------------------------------------------------------------------------
def input_proj_kernel(x_ref, wi_ref, bi_ref, out_ref):
    out_ref[...] = (
        jnp.dot(x_ref[...], wi_ref[...], preferred_element_type=jnp.float32)
        + bi_ref[...]
    )


# ---------------------------------------------------------------------------
# Kernel 2: GRU recurrence, single grid step, lax.fori_loop over time.
#   xproj_ref: (T, B, 3*Hp)  input projections + fused biases [r | z | n]
#   wh_ref   : (Hp, 3*Hp)    fused hidden->gate weights
#   bh_ref   : (1, 3*Hp)     hidden-side bias (zeros for r,z; b_hn in n columns)
#   out_ref  : (T, B, Hp)    per-step hidden states (last row == final hidden)
# ---------------------------------------------------------------------------
def gru_recurrence_kernel(xproj_ref, wh_ref, bh_ref, out_ref):
    T, B, Hp = out_ref.shape

    # Loop-invariant broadcast of the hidden-side bias (hoisted out of the loop).
    bh = jnp.broadcast_to(bh_ref[...], (B, 3 * Hp))

    def step(t, h):
        xp = xproj_ref[t]                                              # (B, 3*Hp)
        hp = jnp.dot(h, wh_ref[...],
                     preferred_element_type=jnp.float32) + bh          # (B, 3*Hp)
        r = jax.nn.sigmoid(xp[:, 0 * Hp:1 * Hp] + hp[:, 0 * Hp:1 * Hp])
        z = jax.nn.sigmoid(xp[:, 1 * Hp:2 * Hp] + hp[:, 1 * Hp:2 * Hp])
        n = jnp.tanh(xp[:, 2 * Hp:3 * Hp] + r * hp[:, 2 * Hp:3 * Hp])
        h_new = n + z * (h - n)                                        # == (1-z)*n + z*h
        out_ref[t] = h_new
        return h_new

    jax.lax.fori_loop(0, T, step, jnp.zeros((B, Hp), jnp.float32))


def init_encoder_params(key, input_dim, embed_dim, hidden_dim):
    ks = jax.random.split(key, 11)
    s = 1.0 / jnp.sqrt(hidden_dim)
    u = lambda k, shape: jax.random.uniform(k, shape, jnp.float32, -s, s)
    return {
        "embedding": jax.random.normal(ks[0], (input_dim, embed_dim), jnp.float32),
        "wir": u(ks[1], (embed_dim, hidden_dim)),
        "wiz": u(ks[2], (embed_dim, hidden_dim)),
        "win": u(ks[3], (embed_dim, hidden_dim)),
        "whr": u(ks[4], (hidden_dim, hidden_dim)),
        "whz": u(ks[5], (hidden_dim, hidden_dim)),
        "whn": u(ks[6], (hidden_dim, hidden_dim)),
        # b_r = b_ir + b_hr, b_z = b_iz + b_hz fused; b_in / b_hn stay split
        # (b_hn is gated by r before the add).
        "b_r": u(ks[7], (1, hidden_dim)),
        "b_z": u(ks[8], (1, hidden_dim)),
        "b_in": u(ks[9], (1, hidden_dim)),
        "b_hn": u(ks[10], (1, hidden_dim)),
    }


def encoder_forward(src, params):
    """src: (B, T) int32 token ids -> (outputs (B, T, H), hidden (1, B, H))."""
    emb_table = params["embedding"]                        # (V, E)
    embedded = jnp.take(emb_table, src, axis=0)            # (B, T, E) -- glue gather
    B, T, E = embedded.shape
    H = params["whr"].shape[0]
    Hp = _round_up(H, 128)                                 # lane-aligned gate width

    # ---- fuse + zero-pad weights/biases (wrapper glue; gate order r, z, n) ----
    pad_c = lambda w: jnp.pad(w, ((0, 0), (0, Hp - H)))          # pad columns
    pad_rc = lambda w: jnp.pad(w, ((0, Hp - H), (0, Hp - H)))    # pad rows+cols
    pad_b = lambda b: jnp.pad(b, ((0, 0), (0, Hp - H)))

    wi = jnp.concatenate(
        [pad_c(params["wir"]), pad_c(params["wiz"]), pad_c(params["win"])], axis=1
    )                                                       # (E, 3*Hp)
    wh = jnp.concatenate(
        [pad_rc(params["whr"]), pad_rc(params["whz"]), pad_rc(params["whn"])], axis=1
    )                                                       # (Hp, 3*Hp)
    bi = jnp.concatenate(
        [pad_b(params["b_r"]), pad_b(params["b_z"]), pad_b(params["b_in"])], axis=1
    )                                                       # (1, 3*Hp)
    zeros_h = jnp.zeros((1, Hp), jnp.float32)
    bh = jnp.concatenate([zeros_h, zeros_h, pad_b(params["b_hn"])], axis=1)  # (1, 3*Hp)

    # (B, T, E) -> (T, B, E) -> (T*B, E): time-major rows for one big GEMM.
    x2d = jnp.transpose(embedded, (1, 0, 2)).astype(jnp.float32).reshape(T * B, E)

    vmem_spec = functools.partial(pl.BlockSpec, memory_space=pltpu.MemorySpace.VMEM)

    # ---- 1) input projection: one parallel GEMM over all T*B rows ----
    xproj2d = pl.pallas_call(
        input_proj_kernel,
        out_shape=jax.ShapeDtypeStruct((T * B, 3 * Hp), jnp.float32),
        in_specs=[vmem_spec(), vmem_spec(), vmem_spec()],
        out_specs=vmem_spec(),
    )(x2d, wi, bi)
    xproj = xproj2d.reshape(T, B, 3 * Hp)

    # ---- 2) sequential recurrence: single pallas_call, fori_loop over time ----
    outs_tbh = pl.pallas_call(
        gru_recurrence_kernel,
        out_shape=jax.ShapeDtypeStruct((T, B, Hp), jnp.float32),
        in_specs=[vmem_spec(), vmem_spec(), vmem_spec()],
        out_specs=vmem_spec(),
    )(xproj, wh, bh)

    outputs = jnp.transpose(outs_tbh[:, :, :H], (1, 0, 2))   # (B, T, H), batch_first
    hidden = outs_tbh[-1:, :, :H]                            # (1, B, H)
    return outputs, hidden


def _reference_forward(src, params):
    """Pure-JAX reference with identical GRU semantics (for correctness check)."""
    emb = jnp.take(params["embedding"], src, axis=0).astype(jnp.float32)  # (B, T, E)
    B, T, E = emb.shape
    H = params["whr"].shape[0]
    x_tbe = jnp.transpose(emb, (1, 0, 2))

    def step(h, x):
        r = jax.nn.sigmoid(x @ params["wir"] + h @ params["whr"] + params["b_r"])
        z = jax.nn.sigmoid(x @ params["wiz"] + h @ params["whz"] + params["b_z"])
        n = jnp.tanh(x @ params["win"] + params["b_in"]
                     + r * (h @ params["whn"] + params["b_hn"]))
        h_new = (1.0 - z) * n + z * h
        return h_new, h_new

    hN, outs = jax.lax.scan(step, jnp.zeros((B, H), jnp.float32), x_tbe)
    return jnp.transpose(outs, (1, 0, 2)), hN[None]


if __name__ == "__main__":
    INPUT_DIM = 16    # vocab size
    EMBED_DIM = 32
    HIDDEN_DIM = 32
    B, T = 2, 8

    key = jax.random.PRNGKey(0)
    k_params, k_src = jax.random.split(key)
    params = init_encoder_params(k_params, INPUT_DIM, EMBED_DIM, HIDDEN_DIM)
    src = jax.random.randint(k_src, (B, T), 0, INPUT_DIM, dtype=jnp.int32)

    outputs, hidden = encoder_forward(src, params)
    jax.block_until_ready(outputs)
    jax.block_until_ready(hidden)

    assert outputs.shape == (B, T, HIDDEN_DIM)
    assert hidden.shape == (1, B, HIDDEN_DIM)

    # Correctness check against a pure-JAX GRU with the same semantics.
    ref_out, ref_hid = _reference_forward(src, params)
    assert float(jnp.max(jnp.abs(outputs - ref_out))) < 1e-4
    assert float(jnp.max(jnp.abs(hidden - ref_hid))) < 1e-4

    print("KERNEL_OK")
</pallas_src>

<mosaic_0001>
module attributes {stable_mosaic.version = 11 : i64} {
  func.func @input_proj_kernel(%arg0: memref<16x32xf32, #tpu.memory_space<vmem>>, %arg1: memref<32x384xf32, #tpu.memory_space<vmem>>, %arg2: memref<1x384xf32, #tpu.memory_space<vmem>>, %arg3: memref<16x384xf32, #tpu.memory_space<vmem>>) attributes {dimension_semantics = [], scalar_prefetch = 0 : i64, scratch_operands = 0 : i64, tpu.core_type = #tpu.core_type<tc>} {
    %c0 = arith.constant 0 : index
    %c0_0 = arith.constant 0 : index
    %0 = vector.load %arg0[%c0, %c0_0] : memref<16x32xf32, #tpu.memory_space<vmem>>, vector<16x32xf32>
    %c0_1 = arith.constant 0 : index
    %c0_2 = arith.constant 0 : index
    %1 = vector.load %arg1[%c0_1, %c0_2] : memref<32x384xf32, #tpu.memory_space<vmem>>, vector<32x384xf32>
    %cst = arith.constant dense<0.000000e+00> : vector<16x384xf32>
    %2 = tpu.matmul %0, %1, %cst {dimension_numbers = #tpu.dot_dimension_numbers<[1], [0], [0], [1], [0, 0, 1, 1], [], []>} : vector<16x32xf32>, vector<32x384xf32>, vector<16x384xf32> -> vector<16x384xf32>
    %c0_3 = arith.constant 0 : index
    %c0_4 = arith.constant 0 : index
    %3 = vector.load %arg2[%c0_3, %c0_4] : memref<1x384xf32, #tpu.memory_space<vmem>>, vector<1x384xf32>
    %4 = vector.broadcast %3 : vector<1x384xf32> to vector<16x384xf32>
    %5 = arith.addf %2, %4 : vector<16x384xf32>
    %c0_5 = arith.constant 0 : index
    %c0_6 = arith.constant 0 : index
    %6 = vector.load %arg3[%c0_5, %c0_6] : memref<16x384xf32, #tpu.memory_space<vmem>>, vector<16x384xf32>
    tpu.vector_store %arg3[%c0_5, %c0_6], %5 {strides = array<i32>} : memref<16x384xf32, #tpu.memory_space<vmem>>, vector<16x384xf32>,
    return
  }
}

</mosaic_0001>

<llo_original>
// kernel: tpu_custom_call.1
$region0: #{tpu_custom_call.1}
  #allocation0 [shape = 'u32[]', space=smem, size = 0x4, offset = 0x4, fixed_abs, tag = 'smem constant byte address 0x4 - core index']
  #allocation1 [shape = 'u32[144,128]{1,0:T(1,128)}', space=vmem, size = 0x12000, scoped, tag = 'internal scratch']
  %s0 = inlined_call_operand.hbm [shape: f32[16,32], index: 0, kind: input, shape index: {}]
  %s1 = inlined_call_operand.hbm [shape: f32[32,384], index: 1, kind: input, shape index: {}]
  %s2 = inlined_call_operand.vmem [shape: f32[1,384], index: 2, kind: input, shape index: {}]
  %s3 = inlined_call_operand.hbm [shape: f32[16,384], index: 3, kind: output, shape index: {}]
  %s4 = sld [smem:[#allocation0]]
  $region30: #{tpu_custom_call.1} parent=0
    _
  %s6 = ssub.s32 1, %s4
  %s7 = scalar_select 0, %s6, %s4
  $region1: #{tpu_custom_call.1} parent=0
    #allocation2 [shape = 'u8[8192]{0}', space=vmem, size = 0x2000, scoped, tag = 'input window, operand 0, single buffered']
    #allocation3 [shape = 's32[1]{0}', space=sflag, size = 0x4, scoped, tag = 'scoped memory for tpu_custom_call.1']
    #allocation4 [shape = 's32[1]{0}', space=sflag, size = 0x4, scoped, tag = 'scoped memory for tpu_custom_call.1']
    #allocation5 [shape = 'u8[49152]{0}', space=vmem, size = 0xc000, scoped, tag = 'input window, operand 1, single buffered']
    #allocation6 [shape = 's32[1]{0}', space=sflag, size = 0x4, scoped, tag = 'scoped memory for tpu_custom_call.1']
    #allocation7 [shape = 'u8[24576]{0}', space=vmem, size = 0x6000, scoped, tag = 'output window, operand 0, single buffered']
    %8 = vsyncpa [#allocation3], 0
    %9 = vsyncpa [#allocation6], 0
    %10 = vsyncpa [#allocation4], 0
    // Predicated region
    $region2: #{tpu_custom_call.1} parent=1 // pred_check
      _
    $region3: #{tpu_custom_call.1} parent=1 // pred_check_branch
      %12 = sbr.rel (0) target = $region5
    $region4: #{tpu_custom_call.1} parent=1 // pred_region
      %s14 = ssub.s32 256, 256
      %15 = vsyncadd [#allocation3], %s14
      %s16 = sshll.u32 [#allocation2], 4
      %s17 = int_to_ptr.vmem [resolvable:$true] %s16
      %22 = dma.hbm_to_vmem [thread:$0]  %s0, 256, %s17, [#allocation3], 128, 128, 8
    $region5: #{tpu_custom_call.1} parent=1 // pred_fallthru
      _
    // Predicated region
    $region6: #{tpu_custom_call.1} parent=1 // pred_check
      _
    $region7: #{tpu_custom_call.1} parent=1 // pred_check_branch
      %24 = sbr.rel (0) target = $region9
    $region8: #{tpu_custom_call.1} parent=1 // pred_region
      %s26 = ssub.s32 1536, 1536
      %27 = vsyncadd [#allocation6], %s26
      %s28 = sshll.u32 [#allocation5], 4
      %s29 = int_to_ptr.vmem [resolvable:$true] %s28
      %34 = dma.hbm_to_vmem [thread:$0]  %s1, 1536, %s29, [#allocation6], 384, 384, 24
    $region9: #{tpu_custom_call.1} parent=1 // pred_fallthru
      _
    // Predicated region
    $region10: #{tpu_custom_call.1} parent=1 // pred_check
      _
    $region11: #{tpu_custom_call.1} parent=1 // pred_check_branch
      %36 = sbr.rel (0) target = $region13
    $region12: #{tpu_custom_call.1} parent=1 // pred_region
      _
    $region13: #{tpu_custom_call.1} parent=1 // pred_fallthru
      _
    // Predicated region
    $region14: #{tpu_custom_call.1} parent=1 // pred_check
      _
    $region15: #{tpu_custom_call.1} parent=1 // pred_check_branch
      %38 = sbr.rel (0) target = $region17
    $region16: #{tpu_custom_call.1} parent=1 // pred_region
      %39 = dma.done [#allocation3], 256
    $region17: #{tpu_custom_call.1} parent=1 // pred_fallthru
      _
    // Predicated region
    $region18: #{tpu_custom_call.1} parent=1 // pred_check
      _
    $region19: #{tpu_custom_call.1} parent=1 // pred_check_branch
      %41 = sbr.rel (0) target = $region21
    $region20: #{tpu_custom_call.1} parent=1 // pred_region
      %42 = dma.done [#allocation6], 1536
    $region21: #{tpu_custom_call.1} parent=1 // pred_fallthru
      _
    %v43 = vld [vmem:[#allocation2] sm:$0xff]
    %v44 = vld [vmem:[#allocation2 + $0x8] sm:$0xff]
    %v45 = vld [vmem:[#allocation5] sm:$0xff]
    %v46 = vld [vmem:[#allocation5 + $0x8] sm:$0xff]
    %v47 = vld [vmem:[#allocation5 + $0x10] sm:$0xff]
    %v48 = vld [vmem:[#allocation5 + $0x18] sm:$0xff]
    %v49 = vld [vmem:[#allocation5 + $0x20] sm:$0xff]
    %v50 = vld [vmem:[#allocation5 + $0x28] sm:$0xff]
    %v51 = vld [vmem:[#allocation5 + $0x30] sm:$0xff]
    %v52 = vld [vmem:[#allocation5 + $0x38] sm:$0xff]
    %v53 = vld [vmem:[#allocation5 + $0x40] sm:$0xff]
    %v54 = vld [vmem:[#allocation5 + $0x48] sm:$0xff]
    %v55 = vld [vmem:[#allocation5 + $0x50] sm:$0xff]
    %v56 = vld [vmem:[#allocation5 + $0x58] sm:$0xff]
    %v57 = vld [vmem:[%s2] sm:$0x7]
    %v59 = vlaneseq
    %v60 = vshrl.u32 %v59, 7
    %v61 = vsub.s32 0, %v60
    %v62 = vrot.slane %v57, %v61
    %v63 = vlaneseq
    %v64 = vshrl.u32 %v63, 7
    %v65 = vsub.s32 1, %v64
    %v66 = vrot.slane %v57, %v65
    %v67 = vlaneseq
    %v68 = vshrl.u32 %v67, 7
    %v69 = vsub.s32 2, %v68
    %v70 = vrot.slane %v57, %v69
    %vm74 = vcmask 261120
    %v76 = vsel %vm74, %v43, 0
    %v79 = vsel %vm74, %v44, 0
    %81 = vmatprep.subr.mxu0 %v46
    %82 = vmatpush1.msra.mxu0 %v45
    %83 = vmatprep.subr.mxu0 %v49
    %84 = vmatpush1.msra.mxu0 %v48
    %85 = vmatprep.subr.mxu0 %v52
    %86 = vmatpush1.msra.mxu0 %v51
    %87 = vmatprep.subr.mxu0 %v55
    %88 = vmatpush1.msra.mxu0 %v54
    %89 = vmatprep.subr.mxu0 0.0
    %90 = vmatpush1.msra.mxu0 0.0
    %91 = vmatprep.subr.mxu0 0.0
    %92 = vmatpush1.msra.mxu0 0.0
    %93 = vmatprep.subr.mxu0 0.0
    %94 = vmatpush1.msra.mxu0 0.0
    %95 = vmatprep.subr.mxu0 0.0
    %96 = vmatpush1.msra.mxu0 0.0
    %97 = vmatprep.subr.mxu0 0.0
    %98 = vmatpush1.msra.mxu0 0.0
    %99 = vmatprep.subr.mxu0 0.0
    %100 = vmatpush1.msra.mxu0 0.0
    %101 = vmatprep.subr.mxu0 0.0
    %102 = vmatpush1.msra.mxu0 0.0
    %103 = vmatprep.subr.mxu0 0.0
    %104 = vmatpush1.msra.mxu0 0.0
    %105 = vmatprep.subr.mxu0 0.0
    %106 = vmatpush1.msra.mxu0 0.0
    %107 = vmatprep.subr.mxu0 0.0
    %108 = vmatpush1.msra.mxu0 0.0
    %109 = vmatprep.subr.mxu0 0.0
    %110 = vmatpush1.msra.mxu0 0.0
    %111 = vmatprep.subr.mxu0 0.0
    %112 = vmatpush1.msra.mxu0 0.0
    %113 = vmatprep.subr.mxu0 0.0
    %114 = vmatpush1.msra.mxu0 0.0
    %115 = vmatprep.subr.mxu0 0.0
    %116 = vmatpush1.msra.mxu0 0.0
    %117 = vmatprep.subr.mxu0 0.0
    %118 = vmatpush1.msra.mxu0 0.0
    %119 = vmatprep.subr.mxu0 0.0
    %120 = vmatpush1.msra.mxu0 0.0
    %121 = vmatprep.subr.mxu0 0.0
    %122 = vmatpush1.msra.mxu0 0.0
    %123 = vmatprep.subr.mxu0 0.0
    %124 = vmatpush1.msra.mxu0 0.0
    %125 = vmatprep.subr.mxu0 0.0
    %126 = vmatpush1.msra.mxu0 0.0
    %127 = vmatprep.subr.mxu0 0.0
    %128 = vmatpush1.msra.mxu0 0.0
    %129 = vmatprep.subr.mxu0 0.0
    %130 = vmatpush1.msra.mxu0 0.0
    %131 = vmatprep.subr.mxu0 0.0
    %132 = vmatpush1.msra.mxu0 0.0
    %133 = vmatprep.subr.mxu0 0.0
    %134 = vmatpush1.msra.mxu0 0.0
    %135 = vmatprep.subr.mxu0 0.0
    %136 = vmatpush1.msra.mxu0 0.0
    %137 = vmatprep.subr.mxu0 0.0
    %138 = vmatpush1.msra.mxu0 0.0
    %139 = vmatprep.subr.mxu0 0.0
    %140 = vmatpush1.msra.mxu0 0.0
    %141 = vmatprep.subr.mxu0 0.0
    %142 = vmatpush1.msra.mxu0 0.0
    %143 = vmatprep.subr.mxu0 0.0
    %144 = vmatpush1.msra.mxu0 0.0
    %145 = vmatprep.mubr.f32.mxu0 0.0
    %146 = vmatmul.mubr.f32.gmra.mrb[0].mxu0 %v76
    %v147 = vpop.f32.mrb[0].mxu0
    %v148 = vadd.f32 %v62, %v147
    %v149 = vpop.f32.mrb[0].mxu0
    %v150 = vadd.f32 %v66, %v149
    %151 = vmatprep.mubr.f32.mxu0 0.0
    %152 = vmatmul.mubr.f32.gmra.mrb[0].mxu0 %v79
    %v153 = vpop.f32.mrb[0].mxu0
    %v154 = vadd.f32 %v62, %v153
    %v155 = vpop.f32.mrb[0].mxu0
    %v156 = vadd.f32 %v66, %v155
    %157 = vdwg.mxu0
    %158 = vmatprep.subr.mxu0 0.0
    %159 = vmatpush1.msra.mxu0 %v47
    %160 = vmatprep.subr.mxu0 0.0
    %161 = vmatpush1.msra.mxu0 %v50
    %162 = vmatprep.subr.mxu0 0.0
    %163 = vmatpush1.msra.mxu0 %v53
    %164 = vmatprep.subr.mxu0 0.0
    %165 = vmatpush1.msra.mxu0 %v56
    %166 = vmatprep.subr.mxu0 0.0
    %167 = vmatpush1.msra.mxu0 0.0
    %168 = vmatprep.subr.mxu0 0.0
    %169 = vmatpush1.msra.mxu0 0.0
    %170 = vmatprep.subr.mxu0 0.0
    %171 = vmatpush1.msra.mxu0 0.0
    %172 = vmatprep.subr.mxu0 0.0
    %173 = vmatpush1.msra.mxu0 0.0
    %174 = vmatprep.subr.mxu0 0.0
    %175 = vmatpush1.msra.mxu0 0.0
    %176 = vmatprep.subr.mxu0 0.0
    %177 = vmatpush1.msra.mxu0 0.0
    %178 = vmatprep.subr.mxu0 0.0
    %179 = vmatpush1.msra.mxu0 0.0
    %180 = vmatprep.subr.mxu0 0.0
    %181 = vmatpush1.msra.mxu0 0.0
    %182 = vmatprep.subr.mxu0 0.0
    %183 = vmatpush1.msra.mxu0 0.0
    %184 = vmatprep.subr.mxu0 0.0
    %185 = vmatpush1.msra.mxu0 0.0
    %186 = vmatprep.subr.mxu0 0.0
    %187 = vmatpush1.msra.mxu0 0.0
    %188 = vmatprep.subr.mxu0 0.0
    %189 = vmatpush1.msra.mxu0 0.0
    %190 = vmatprep.subr.mxu0 0.0
    %191 = vmatpush1.msra.mxu0 0.0
    %192 = vmatprep.subr.mxu0 0.0
    %193 = vmatpush1.msra.mxu0 0.0
    %194 = vmatprep.subr.mxu0 0.0
    %195 = vmatpush1.msra.mxu0 0.0
    %196 = vmatprep.subr.mxu0 0.0
    %197 = vmatpush1.msra.mxu0 0.0
    %198 = vmatprep.subr.mxu0 0.0
    %199 = vmatpush1.msra.mxu0 0.0
    %200 = vmatprep.subr.mxu0 0.0
    %201 = vmatpush1.msra.mxu0 0.0
    %202 = vmatprep.subr.mxu0 0.0
    %203 = vmatpush1.msra.mxu0 0.0
    %204 = vmatprep.subr.mxu0 0.0
    %205 = vmatpush1.msra.mxu0 0.0
    %206 = vmatprep.subr.mxu0 0.0
    %207 = vmatpush1.msra.mxu0 0.0
    %208 = vmatprep.subr.mxu0 0.0
    %209 = vmatpush1.msra.mxu0 0.0
    %210 = vmatprep.subr.mxu0 0.0
    %211 = vmatpush1.msra.mxu0 0.0
    %212 = vmatprep.subr.mxu0 0.0
    %213 = vmatpush1.msra.mxu0 0.0
    %214 = vmatprep.subr.mxu0 0.0
    %215 = vmatpush1.msra.mxu0 0.0
    %216 = vmatprep.subr.mxu0 0.0
    %217 = vmatpush1.msra.mxu0 0.0
    %218 = vmatprep.subr.mxu0 0.0
    %219 = vmatpush1.msra.mxu0 0.0
    %220 = vmatprep.subr.mxu0 0.0
    %221 = vmatpush1.msra.mxu0 0.0
    %222 = vmatprep.mubr.f32.mxu0 0.0
    %223 = vmatmul.mubr.f32.gmra.mrb[0].mxu0 %v76
    %v224 = vpop.f32.mrb[0].mxu0
    %v225 = vadd.f32 %v70, %v224
    %v226 = vpop.f32.mrb[0].mxu0
    %227 = vmatprep.mubr.f32.mxu0 0.0
    %228 = vmatmul.mubr.f32.gmra.mrb[0].mxu0 %v79
    %v229 = vpop.f32.mrb[0].mxu0
    %v230 = vadd.f32 %v70, %v229
    %v231 = vpop.f32.mrb[0].mxu0
    %232 = vdwg.mxu0
    %233 = vst [vmem:[#allocation7] sm:$0xff] %v148
    %234 = vst [vmem:[#allocation7 + $0x8] sm:$0xff] %v150
    %235 = vst [vmem:[#allocation7 + $0x10] sm:$0xff] %v225
    %236 = vst [vmem:[#allocation7 + $0x18] sm:$0xff] %v154
    %237 = vst [vmem:[#allocation7 + $0x20] sm:$0xff] %v156
    %238 = vst [vmem:[#allocation7 + $0x28] sm:$0xff] %v230
    // Predicated region
    $region22: #{tpu_custom_call.1} parent=1 // pred_check
      _
    $region23: #{tpu_custom_call.1} parent=1 // pred_check_branch
      %240 = sbr.rel (0) target = $region25
    $region24: #{tpu_custom_call.1} parent=1 // pred_region
      %s242 = ssub.s32 768, 768
      %243 = vsyncadd [#allocation4], %s242
      %s244 = sshll.u32 [#allocation7], 4
      %s245 = int_to_ptr.vmem [resolvable:$true] %s244
      %250 = dma.vmem_to_hbm [thread:$0]  %s245, 768, %s3, [#allocation4], 384, 384, 24
    $region25: #{tpu_custom_call.1} parent=1 // pred_fallthru
      _
    // Predicated region
    $region26: #{tpu_custom_call.1} parent=1 // pred_check
      _
    $region27: #{tpu_custom_call.1} parent=1 // pred_check_branch
      %252 = sbr.rel (0) target = $region29
    $region28: #{tpu_custom_call.1} parent=1 // pred_region
      %253 = dma.done [#allocation4], 768
    $region29: #{tpu_custom_call.1} parent=1 // pred_fallthru
      _
    %254 = vsyncpa [#allocation3], 1
    %255 = vsyncpa [#allocation6], 1
    %256 = vsyncpa [#allocation4], 1

</llo_original>
